<compile_context>
chip_gen: v7x
topology: tpu7x:2x2x1
jax: 0.10.0
libtpu: 0.0.40
codegen_flags: <defaults>
</compile_context>

<pallas_src>
import functools
import math

import jax
import jax.numpy as jnp
from jax import lax
from jax.experimental import pallas as pl
from jax.experimental.pallas import tpu as pltpu


# ---------------------------------------------------------------------------
# Fused kernel
#   x_ref   : (1, Cin,  H*W)   full image (channels on sublanes, spatial on lanes)
#   o_ref   : (1, Cout, TH*W)  one row tile of the output
#   hid_scr : (hidden, PAD + H*W + PAD) VMEM scratch; zero borders act as conv padding
# ---------------------------------------------------------------------------
def _inverted_block_kernel(x_ref, wpw_ref, b1_ref, wdw_ref, b2_ref,
                           wpwl_ref, b3_ref, o_ref, hid_scr,
                           *, H, W, TH, PAD):
    HW = H * W
    TW = TH * W
    i = pl.program_id(1)                      # row-tile index
    hidden = wpw_ref.shape[0]

    # ---- stage 1: 1x1 expand conv (BN scale folded into weights) + bias + ReLU6 ----
    # TODO(synk): for very large H*W, compute only a TH+2-row halo slab here instead of
    #             the full image (keeps redundant compute / VMEM bounded on v7x 64 MiB).
    x = x_ref[0]                                                        # (Cin, HW)
    hid = jnp.dot(wpw_ref[...], x, preferred_element_type=jnp.float32)  # (hidden, HW)
    hid = jnp.clip(hid + b1_ref[...], 0.0, 6.0)

    # Stage the hidden activation into a zero-padded VMEM scratch so out-of-image rows
    # read as zeros (replaces the old HBM round-trip + wrapper-side jnp.pad).
    hid_scr[:, :PAD] = jnp.zeros((hidden, PAD), jnp.float32)
    hid_scr[:, PAD:PAD + HW] = hid
    hid_scr[:, PAD + HW:] = jnp.zeros((hidden, PAD), jnp.float32)

    # ---- stage 2: 3x3 depthwise conv (BN scale folded) + bias + ReLU6, this row tile --
    if TH == H:
        wide = hid_scr[...]                                   # (hidden, TW + 2*PAD)
    else:
        base0 = pl.multiple_of(i * TW, 128)                   # 128-aligned lane start
        wide = hid_scr[:, pl.ds(base0, TW + 2 * PAD)]

    lane = lax.broadcasted_iota(jnp.int32, (1, TW), 1)
    col = lane % W                                            # column inside the image
    wdw = wdw_ref[...]                                        # (hidden, 9)
    acc = jnp.zeros((hidden, TW), jnp.float32)
    for k in range(9):
        dy, dx = k // 3 - 1, k % 3 - 1
        off = PAD + dy * W + dx                               # static lane offset
        win = wide[:, off:off + TW]                           # (hidden, TW)
        if dx != 0:   # mask columns that wrapped across the image's W boundary
            ok = (col + dx >= 0) & (col + dx < W)
            win = jnp.where(ok, win, 0.0)
        acc = acc + win * wdw[:, k:k + 1]
    dw = jnp.clip(acc + b2_ref[...], 0.0, 6.0)                # (hidden, TW)

    # ---- stage 3: 1x1 project conv (BN scale folded) + bias + residual add ----------
    out = jnp.dot(wpwl_ref[...], dw, preferred_element_type=jnp.float32)  # (Cout, TW)
    if TH == H:
        res = x_ref[0]
    else:
        res = x_ref[0, :, pl.ds(pl.multiple_of(i * TW, 128), TW)]
    o_ref[0] = out + b3_ref[...] + res


# ---------------------------------------------------------------------------
# Wrapper
# ---------------------------------------------------------------------------
def _fold_bn(gamma, beta, mean, var, eps=1e-5):
    scale = gamma / jnp.sqrt(var + eps)
    return scale, beta - mean * scale


def _pick_row_tile(H, W):
    """Row tile TH dividing H with TH*W a multiple of 128 (lane-dense output blocks)."""
    th = 128 // math.gcd(128, W)      # smallest row count giving lane-aligned width
    if H % th != 0:
        return H                      # fall back to whole-image tiles
    TH = th
    while TH * 2 < H and H % (TH * 2) == 0 and TH * W < 1024:
        TH *= 2
    return TH


@jax.jit
def inverted_block_forward(x_nchw, params):
    """InvertedBlock forward (expand_ratio > 1, stride = 1, use_bn, ReLU6, residual)."""
    # TODO(synk): expand_ratio == 1, stride == 2, no-BN and PReLU branches of the
    #             PyTorch module are not implemented (only the residual configuration).
    N, Cin, H, W = x_nchw.shape
    hidden = params["w_pw"].shape[0]
    Cout = params["w_pwl"].shape[0]
    assert Cin == Cout, "residual configuration requires ch_in == ch_out"
    HW = H * W

    TH = _pick_row_tile(H, W)
    n_h = H // TH
    PAD = max(128, -(-(W + 1) // 128) * 128)   # zero border >= W+1, lane-aligned

    s1, b1 = _fold_bn(params["bn1_gamma"], params["bn1_beta"],
                      params["bn1_mean"], params["bn1_var"])
    s2, b2 = _fold_bn(params["bn2_gamma"], params["bn2_beta"],
                      params["bn2_mean"], params["bn2_var"])
    s3, b3 = _fold_bn(params["bn3_gamma"], params["bn3_beta"],
                      params["bn3_mean"], params["bn3_var"])

    # Fold BN scales into the conv weights (tiny tensors).
    # TODO(synk): cast matmul operands to bf16 on v6e/v7x; kept f32 here so the result
    #             matches the f32 reference within 1e-4.
    w_pw = params["w_pw"][:, :, 0, 0] * s1[:, None]                  # (hidden, Cin)
    w_dw = params["w_dw"][:, 0].reshape(hidden, 9) * s2[:, None]     # (hidden, 9)
    w_pwl = params["w_pwl"][:, :, 0, 0] * s3[:, None]                # (Cout, hidden)

    x2d = x_nchw.reshape(N, Cin, HW).astype(jnp.float32)             # free reshape

    kernel = functools.partial(_inverted_block_kernel, H=H, W=W, TH=TH, PAD=PAD)
    out = pl.pallas_call(
        kernel,
        out_shape=jax.ShapeDtypeStruct((N, Cout, HW), jnp.float32),
        grid=(N, n_h),
        in_specs=[
            pl.BlockSpec((1, Cin, HW), lambda n, i: (n, 0, 0)),      # stays resident
            pl.BlockSpec((hidden, Cin), lambda n, i: (0, 0)),
            pl.BlockSpec((hidden, 1), lambda n, i: (0, 0)),
            pl.BlockSpec((hidden, 9), lambda n, i: (0, 0)),
            pl.BlockSpec((hidden, 1), lambda n, i: (0, 0)),
            pl.BlockSpec((Cout, hidden), lambda n, i: (0, 0)),
            pl.BlockSpec((Cout, 1), lambda n, i: (0, 0)),
        ],
        out_specs=pl.BlockSpec((1, Cout, TH * W), lambda n, i: (n, 0, i)),
        scratch_shapes=[pltpu.VMEM((hidden, PAD + HW + PAD), jnp.float32)],
        compiler_params=pltpu.CompilerParams(
            dimension_semantics=("parallel", "parallel")),
    )(x2d, w_pw, b1[:, None], w_dw, b2[:, None], w_pwl, b3[:, None])

    return out.reshape(N, Cout, H, W)                                # free reshape


# ---------------------------------------------------------------------------
# Parameter construction + pure-JAX reference (NCHW, mirrors the PyTorch forward)
# ---------------------------------------------------------------------------
def make_params(key, ch_in, ch_out, expand_ratio):
    hidden = ch_in * expand_ratio
    ks = jax.random.split(key, 15)
    p = {}
    p["w_pw"] = 0.1 * jax.random.normal(ks[0], (hidden, ch_in, 1, 1), jnp.float32)
    p["w_dw"] = 0.1 * jax.random.normal(ks[1], (hidden, 1, 3, 3), jnp.float32)
    p["w_pwl"] = 0.1 * jax.random.normal(ks[2], (ch_out, hidden, 1, 1), jnp.float32)
    for idx, (i, c) in enumerate(zip((1, 2, 3), (hidden, hidden, ch_out))):
        base = 3 + 4 * idx
        p[f"bn{i}_gamma"] = 0.5 + jax.random.uniform(ks[base + 0], (c,), jnp.float32)
        p[f"bn{i}_beta"] = 0.1 * jax.random.normal(ks[base + 1], (c,), jnp.float32)
        p[f"bn{i}_mean"] = 0.1 * jax.random.normal(ks[base + 2], (c,), jnp.float32)
        p[f"bn{i}_var"] = 0.5 + jax.random.uniform(ks[base + 3], (c,), jnp.float32)
    return p


def reference_forward(x_nchw, params):
    def bn(y, g, b, m, v, eps=1e-5):
        s = g / jnp.sqrt(v + eps)
        return y * s[None, :, None, None] + (b - m * s)[None, :, None, None]

    dn = ("NCHW", "OIHW", "NCHW")
    y = lax.conv_general_dilated(x_nchw, params["w_pw"], (1, 1), "VALID",
                                 dimension_numbers=dn)
    y = jnp.clip(bn(y, params["bn1_gamma"], params["bn1_beta"],
                    params["bn1_mean"], params["bn1_var"]), 0.0, 6.0)
    hidden = params["w_dw"].shape[0]
    y = lax.conv_general_dilated(y, params["w_dw"], (1, 1), ((1, 1), (1, 1)),
                                 dimension_numbers=dn, feature_group_count=hidden)
    y = jnp.clip(bn(y, params["bn2_gamma"], params["bn2_beta"],
                    params["bn2_mean"], params["bn2_var"]), 0.0, 6.0)
    y = lax.conv_general_dilated(y, params["w_pwl"], (1, 1), "VALID",
                                 dimension_numbers=dn)
    y = bn(y, params["bn3_gamma"], params["bn3_beta"],
           params["bn3_mean"], params["bn3_var"])
    return y + x_nchw


if __name__ == "__main__":
    # Module config: ch_in = ch_out = 8, expand_ratio = 4 (hidden = 32), stride = 1,
    # use_bn = True, use_relu = True  -> residual connection active.
    N, C, H, W = 2, 8, 16, 16
    expand_ratio = 4

    key = jax.random.PRNGKey(0)
    k_x, k_p = jax.random.split(key)
    x = jax.random.normal(k_x, (N, C, H, W), jnp.float32)
    params = make_params(k_p, C, C, expand_ratio)

    out = inverted_block_forward(x, params)
    out = jax.block_until_ready(out)

    ref = reference_forward(x, params)
    assert out.shape == ref.shape == (N, C, H, W)
    err = float(jnp.max(jnp.abs(out - ref)))
    assert err < 1e-4, err

    print("KERNEL_OK")
</pallas_src>

<mosaic_0001>
module attributes {stable_mosaic.version = 11 : i64} {
  func.func @_inverted_block_kernel(%arg0: i32, %arg1: i32, %arg2: memref<1x8x256xf32, #tpu.memory_space<vmem>>, %arg3: memref<32x8xf32, #tpu.memory_space<vmem>>, %arg4: memref<32x1xf32, #tpu.memory_space<vmem>>, %arg5: memref<32x9xf32, #tpu.memory_space<vmem>>, %arg6: memref<32x1xf32, #tpu.memory_space<vmem>>, %arg7: memref<8x32xf32, #tpu.memory_space<vmem>>, %arg8: memref<8x1xf32, #tpu.memory_space<vmem>>, %arg9: memref<1x8x128xf32, #tpu.memory_space<vmem>>, %arg10: memref<32x512xf32, #tpu.memory_space<vmem>>) attributes {dimension_semantics = [#tpu.dimension_semantics<parallel>, #tpu.dimension_semantics<parallel>], iteration_bounds = array<i64: 2, 2>, scalar_prefetch = 0 : i64, scratch_operands = 1 : i64, tpu.core_type = #tpu.core_type<tc>, window_params = [{transform_indices = @transform_0, window_bounds = array<i64: 1, 8, 256>}, {pipeline_mode = #tpu.pipeline_mode<synchronous>, transform_indices = @transform_1, window_bounds = array<i64: 32, 8>}, {pipeline_mode = #tpu.pipeline_mode<synchronous>, transform_indices = @transform_2, window_bounds = array<i64: 32, 1>}, {pipeline_mode = #tpu.pipeline_mode<synchronous>, transform_indices = @transform_3, window_bounds = array<i64: 32, 9>}, {pipeline_mode = #tpu.pipeline_mode<synchronous>, transform_indices = @transform_4, window_bounds = array<i64: 32, 1>}, {pipeline_mode = #tpu.pipeline_mode<synchronous>, transform_indices = @transform_5, window_bounds = array<i64: 8, 32>}, {pipeline_mode = #tpu.pipeline_mode<synchronous>, transform_indices = @transform_6, window_bounds = array<i64: 8, 1>}, {transform_indices = @transform_7, window_bounds = array<i64: 1, 8, 128>}]} {
    %c0 = arith.constant 0 : index
    %c0_0 = arith.constant 0 : index
    %c0_1 = arith.constant 0 : index
    %0 = vector.load %arg2[%c0, %c0_0, %c0_1] : memref<1x8x256xf32, #tpu.memory_space<vmem>>, vector<1x8x256xf32>
    %1 = vector.shape_cast %0 : vector<1x8x256xf32> to vector<8x256xf32>
    %c0_2 = arith.constant 0 : index
    %c0_3 = arith.constant 0 : index
    %2 = vector.load %arg3[%c0_2, %c0_3] : memref<32x8xf32, #tpu.memory_space<vmem>>, vector<32x8xf32>
    %cst = arith.constant dense<0.000000e+00> : vector<32x256xf32>
    %3 = tpu.matmul %2, %1, %cst {dimension_numbers = #tpu.dot_dimension_numbers<[1], [0], [0], [1], [0, 0, 1, 1], [], []>} : vector<32x8xf32>, vector<8x256xf32>, vector<32x256xf32> -> vector<32x256xf32>
    %c0_4 = arith.constant 0 : index
    %c0_5 = arith.constant 0 : index
    %4 = vector.load %arg4[%c0_4, %c0_5] : memref<32x1xf32, #tpu.memory_space<vmem>>, vector<32x1xf32>
    %5 = vector.broadcast %4 : vector<32x1xf32> to vector<32x256xf32>
    %6 = arith.addf %3, %5 : vector<32x256xf32>
    %cst_6 = arith.constant 0.000000e+00 : f32
    %cst_7 = arith.constant 6.000000e+00 : f32
    %7 = vector.broadcast %cst_6 : f32 to vector<32x256xf32>
    %8 = arith.maximumf %7, %6 : vector<32x256xf32>
    %9 = vector.broadcast %cst_7 : f32 to vector<32x256xf32>
    %10 = arith.minimumf %9, %8 : vector<32x256xf32>
    %cst_8 = arith.constant 0.000000e+00 : f32
    %11 = vector.broadcast %cst_8 : f32 to vector<32x128xf32>
    %c0_9 = arith.constant 0 : index
    %c0_10 = arith.constant 0 : index
    %12 = vector.load %arg10[%c0_9, %c0_10] : memref<32x512xf32, #tpu.memory_space<vmem>>, vector<32x128xf32>
    tpu.vector_store %arg10[%c0_9, %c0_10], %11 {strides = array<i32>} : memref<32x512xf32, #tpu.memory_space<vmem>>, vector<32x128xf32>,
    %c0_11 = arith.constant 0 : index
    %c128 = arith.constant 128 : index
    %13 = vector.load %arg10[%c0_11, %c128] : memref<32x512xf32, #tpu.memory_space<vmem>>, vector<32x256xf32>
    tpu.vector_store %arg10[%c0_11, %c128], %10 {strides = array<i32>} : memref<32x512xf32, #tpu.memory_space<vmem>>, vector<32x256xf32>,
    %cst_12 = arith.constant 0.000000e+00 : f32
    %14 = vector.broadcast %cst_12 : f32 to vector<32x128xf32>
    %c0_13 = arith.constant 0 : index
    %c384 = arith.constant 384 : index
    %15 = vector.load %arg10[%c0_13, %c384] : memref<32x512xf32, #tpu.memory_space<vmem>>, vector<32x128xf32>
    tpu.vector_store %arg10[%c0_13, %c384], %14 {strides = array<i32>} : memref<32x512xf32, #tpu.memory_space<vmem>>, vector<32x128xf32>,
    %c128_i32 = arith.constant 128 : i32
    %16 = arith.muli %arg1, %c128_i32 : i32
    %17 = tpu.assume_multiple %16, 128 : i32
    %c0_14 = arith.constant 0 : index
    %18 = arith.index_cast %17 : i32 to index
    %19 = vector.load %arg10[%c0_14, %18] : memref<32x512xf32, #tpu.memory_space<vmem>>, vector<32x384xf32>
    %20 = tpu.iota {dimensions = array<i32: 1>} : vector<1x128xi32>
    %c16_i32 = arith.constant 16 : i32
    %c0_i32 = arith.constant 0 : i32
    %21 = arith.cmpi eq, %c16_i32, %c0_i32 : i32
    %c1_i32 = arith.constant 1 : i32
    %22 = arith.select %21, %c1_i32, %c16_i32 : i32
    %23 = vector.broadcast %22 : i32 to vector<1x128xi32>
    %24 = arith.remsi %20, %23 : vector<1x128xi32>
    %c0_i32_15 = arith.constant 0 : i32
    %25 = vector.broadcast %c0_i32_15 : i32 to vector<1x128xi32>
    %26 = arith.cmpi ne, %24, %25 : vector<1x128xi32>
    %c0_i32_16 = arith.constant 0 : i32
    %27 = vector.broadcast %c0_i32_16 : i32 to vector<1x128xi32>
    %28 = arith.cmpi slt, %24, %27 : vector<1x128xi32>
    %c0_i32_17 = arith.constant 0 : i32
    %29 = arith.cmpi slt, %22, %c0_i32_17 : i32
    %30 = vector.broadcast %29 : i1 to vector<1x128xi1>
    %31 = vector.broadcast %30 : vector<1x128xi1> to vector<1x128xi1>
    %32 = arith.xori %28, %31 : vector<1x128xi1>
    %33 = arith.andi %32, %26 : vector<1x128xi1>
    %34 = vector.broadcast %22 : i32 to vector<1x128xi32>
    %35 = arith.addi %24, %34 : vector<1x128xi32>
    %36 = arith.select %33, %35, %24 : vector<1x128xi1>, vector<1x128xi32>
    %c0_18 = arith.constant 0 : index
    %c0_19 = arith.constant 0 : index
    %37 = vector.load %arg5[%c0_18, %c0_19] : memref<32x9xf32, #tpu.memory_space<vmem>>, vector<32x9xf32>
    %cst_20 = arith.constant 0.000000e+00 : f32
    %38 = vector.broadcast %cst_20 : f32 to vector<32x128xf32>
    %39 = vector.extract_strided_slice %19 {offsets = [0, 111], sizes = [32, 128], strides = [1, 1]} : vector<32x384xf32> to vector<32x128xf32>
    %c-1_i32 = arith.constant -1 : i32
    %40 = vector.broadcast %c-1_i32 : i32 to vector<1x128xi32>
    %41 = arith.addi %36, %40 : vector<1x128xi32>
    %c0_i32_21 = arith.constant 0 : i32
    %42 = vector.broadcast %c0_i32_21 : i32 to vector<1x128xi32>
    %43 = arith.cmpi sge, %41, %42 : vector<1x128xi32>
    %c-1_i32_22 = arith.constant -1 : i32
    %44 = vector.broadcast %c-1_i32_22 : i32 to vector<1x128xi32>
    %45 = arith.addi %36, %44 : vector<1x128xi32>
    %c16_i32_23 = arith.constant 16 : i32
    %46 = vector.broadcast %c16_i32_23 : i32 to vector<1x128xi32>
    %47 = arith.cmpi slt, %45, %46 : vector<1x128xi32>
    %48 = arith.andi %43, %47 : vector<1x128xi1>
    %cst_24 = arith.constant 0.000000e+00 : f32
    %49 = vector.shape_cast %48 : vector<1x128xi1> to vector<1x128xi1>
    %50 = vector.broadcast %49 : vector<1x128xi1> to vector<32x128xi1>
    %51 = vector.broadcast %cst_24 : f32 to vector<32x128xf32>
    %52 = arith.select %50, %39, %51 : vector<32x128xi1>, vector<32x128xf32>
    %53 = vector.extract_strided_slice %37 {offsets = [0, 0], sizes = [32, 1], strides = [1, 1]} : vector<32x9xf32> to vector<32x1xf32>
    %54 = vector.broadcast %53 : vector<32x1xf32> to vector<32x128xf32>
    %55 = arith.mulf %52, %54 : vector<32x128xf32>
    %56 = arith.addf %38, %55 : vector<32x128xf32>
    %57 = vector.extract_strided_slice %19 {offsets = [0, 112], sizes = [32, 128], strides = [1, 1]} : vector<32x384xf32> to vector<32x128xf32>
    %58 = vector.extract_strided_slice %37 {offsets = [0, 1], sizes = [32, 1], strides = [1, 1]} : vector<32x9xf32> to vector<32x1xf32>
    %59 = vector.broadcast %58 : vector<32x1xf32> to vector<32x128xf32>
    %60 = arith.mulf %57, %59 : vector<32x128xf32>
    %61 = arith.addf %56, %60 : vector<32x128xf32>
    %62 = vector.extract_strided_slice %19 {offsets = [0, 113], sizes = [32, 128], strides = [1, 1]} : vector<32x384xf32> to vector<32x128xf32>
    %c1_i32_25 = arith.constant 1 : i32
    %63 = vector.broadcast %c1_i32_25 : i32 to vector<1x128xi32>
    %64 = arith.addi %36, %63 : vector<1x128xi32>
    %c0_i32_26 = arith.constant 0 : i32
    %65 = vector.broadcast %c0_i32_26 : i32 to vector<1x128xi32>
    %66 = arith.cmpi sge, %64, %65 : vector<1x128xi32>
    %c1_i32_27 = arith.constant 1 : i32
    %67 = vector.broadcast %c1_i32_27 : i32 to vector<1x128xi32>
    %68 = arith.addi %36, %67 : vector<1x128xi32>
    %c16_i32_28 = arith.constant 16 : i32
    %69 = vector.broadcast %c16_i32_28 : i32 to vector<1x128xi32>
    %70 = arith.cmpi slt, %68, %69 : vector<1x128xi32>
    %71 = arith.andi %66, %70 : vector<1x128xi1>
    %cst_29 = arith.constant 0.000000e+00 : f32
    %72 = vector.shape_cast %71 : vector<1x128xi1> to vector<1x128xi1>
    %73 = vector.broadcast %72 : vector<1x128xi1> to vector<32x128xi1>
    %74 = vector.broadcast %cst_29 : f32 to vector<32x128xf32>
    %75 = arith.select %73, %62, %74 : vector<32x128xi1>, vector<32x128xf32>
    %76 = vector.extract_strided_slice %37 {offsets = [0, 2], sizes = [32, 1], strides = [1, 1]} : vector<32x9xf32> to vector<32x1xf32>
    %77 = vector.broadcast %76 : vector<32x1xf32> to vector<32x128xf32>
    %78 = arith.mulf %75, %77 : vector<32x128xf32>
    %79 = arith.addf %61, %78 : vector<32x128xf32>
    %80 = vector.extract_strided_slice %19 {offsets = [0, 127], sizes = [32, 128], strides = [1, 1]} : vector<32x384xf32> to vector<32x128xf32>
    %c-1_i32_30 = arith.constant -1 : i32
    %81 = vector.broadcast %c-1_i32_30 : i32 to vector<1x128xi32>
    %82 = arith.addi %36, %81 : vector<1x128xi32>
    %c0_i32_31 = arith.constant 0 : i32
    %83 = vector.broadcast %c0_i32_31 : i32 to vector<1x128xi32>
    %84 = arith.cmpi sge, %82, %83 : vector<1x128xi32>
    %c-1_i32_32 = arith.constant -1 : i32
    %85 = vector.broadcast %c-1_i32_32 : i32 to vector<1x128xi32>
    %86 = arith.addi %36, %85 : vector<1x128xi32>
    %c16_i32_33 = arith.constant 16 : i32
    %87 = vector.broadcast %c16_i32_33 : i32 to vector<1x128xi32>
    %88 = arith.cmpi slt, %86, %87 : vector<1x128xi32>
    %89 = arith.andi %84, %88 : vector<1x128xi1>
    %cst_34 = arith.constant 0.000000e+00 : f32
    %90 = vector.shape_cast %89 : vector<1x128xi1> to vector<1x128xi1>
    %91 = vector.broadcast %90 : vector<1x128xi1> to vector<32x128xi1>
    %92 = vector.broadcast %cst_34 : f32 to vector<32x128xf32>
    %93 = arith.select %91, %80, %92 : vector<32x128xi1>, vector<32x128xf32>
    %94 = vector.extract_strided_slice %37 {offsets = [0, 3], sizes = [32, 1], strides = [1, 1]} : vector<32x9xf32> to vector<32x1xf32>
    %95 = vector.broadcast %94 : vector<32x1xf32> to vector<32x128xf32>
    %96 = arith.mulf %93, %95 : vector<32x128xf32>
    %97 = arith.addf %79, %96 : vector<32x128xf32>
    %98 = vector.extract_strided_slice %19 {offsets = [0, 128], sizes = [32, 128], strides = [1, 1]} : vector<32x384xf32> to vector<32x128xf32>
    %99 = vector.extract_strided_slice %37 {offsets = [0, 4], sizes = [32, 1], strides = [1, 1]} : vector<32x9xf32> to vector<32x1xf32>
    %100 = vector.broadcast %99 : vector<32x1xf32> to vector<32x128xf32>
    %101 = arith.mulf %98, %100 : vector<32x128xf32>
    %102 = arith.addf %97, %101 : vector<32x128xf32>
    %103 = vector.extract_strided_slice %19 {offsets = [0, 129], sizes = [32, 128], strides = [1, 1]} : vector<32x384xf32> to vector<32x128xf32>
    %c1_i32_35 = arith.constant 1 : i32
    %104 = vector.broadcast %c1_i32_35 : i32 to vector<1x128xi32>
    %105 = arith.addi %36, %104 : vector<1x128xi32>
    %c0_i32_36 = arith.constant 0 : i32
    %106 = vector.broadcast %c0_i32_36 : i32 to vector<1x128xi32>
    %107 = arith.cmpi sge, %105, %106 : vector<1x128xi32>
    %c1_i32_37 = arith.constant 1 : i32
    %108 = vector.broadcast %c1_i32_37 : i32 to vector<1x128xi32>
    %109 = arith.addi %36, %108 : vector<1x128xi32>
    %c16_i32_38 = arith.constant 16 : i32
    %110 = vector.broadcast %c16_i32_38 : i32 to vector<1x128xi32>
    %111 = arith.cmpi slt, %109, %110 : vector<1x128xi32>
    %112 = arith.andi %107, %111 : vector<1x128xi1>
    %cst_39 = arith.constant 0.000000e+00 : f32
    %113 = vector.shape_cast %112 : vector<1x128xi1> to vector<1x128xi1>
    %114 = vector.broadcast %113 : vector<1x128xi1> to vector<32x128xi1>
    %115 = vector.broadcast %cst_39 : f32 to vector<32x128xf32>
    %116 = arith.select %114, %103, %115 : vector<32x128xi1>, vector<32x128xf32>
    %117 = vector.extract_strided_slice %37 {offsets = [0, 5], sizes = [32, 1], strides = [1, 1]} : vector<32x9xf32> to vector<32x1xf32>
    %118 = vector.broadcast %117 : vector<32x1xf32> to vector<32x128xf32>
    %119 = arith.mulf %116, %118 : vector<32x128xf32>
    %120 = arith.addf %102, %119 : vector<32x128xf32>
    %121 = vector.extract_strided_slice %19 {offsets = [0, 143], sizes = [32, 128], strides = [1, 1]} : vector<32x384xf32> to vector<32x128xf32>
    %c-1_i32_40 = arith.constant -1 : i32
    %122 = vector.broadcast %c-1_i32_40 : i32 to vector<1x128xi32>
    %123 = arith.addi %36, %122 : vector<1x128xi32>
    %c0_i32_41 = arith.constant 0 : i32
    %124 = vector.broadcast %c0_i32_41 : i32 to vector<1x128xi32>
    %125 = arith.cmpi sge, %123, %124 : vector<1x128xi32>
    %c-1_i32_42 = arith.constant -1 : i32
    %126 = vector.broadcast %c-1_i32_42 : i32 to vector<1x128xi32>
    %127 = arith.addi %36, %126 : vector<1x128xi32>
    %c16_i32_43 = arith.constant 16 : i32
    %128 = vector.broadcast %c16_i32_43 : i32 to vector<1x128xi32>
    %129 = arith.cmpi slt, %127, %128 : vector<1x128xi32>
    %130 = arith.andi %125, %129 : vector<1x128xi1>
    %cst_44 = arith.constant 0.000000e+00 : f32
    %131 = vector.shape_cast %130 : vector<1x128xi1> to vector<1x128xi1>
    %132 = vector.broadcast %131 : vector<1x128xi1> to vector<32x128xi1>
    %133 = vector.broadcast %cst_44 : f32 to vector<32x128xf32>
    %134 = arith.select %132, %121, %133 : vector<32x128xi1>, vector<32x128xf32>
    %135 = vector.extract_strided_slice %37 {offsets = [0, 6], sizes = [32, 1], strides = [1, 1]} : vector<32x9xf32> to vector<32x1xf32>
    %136 = vector.broadcast %135 : vector<32x1xf32> to vector<32x128xf32>
    %137 = arith.mulf %134, %136 : vector<32x128xf32>
    %138 = arith.addf %120, %137 : vector<32x128xf32>
    %139 = vector.extract_strided_slice %19 {offsets = [0, 144], sizes = [32, 128], strides = [1, 1]} : vector<32x384xf32> to vector<32x128xf32>
    %140 = vector.extract_strided_slice %37 {offsets = [0, 7], sizes = [32, 1], strides = [1, 1]} : vector<32x9xf32> to vector<32x1xf32>
    %141 = vector.broadcast %140 : vector<32x1xf32> to vector<32x128xf32>
    %142 = arith.mulf %139, %141 : vector<32x128xf32>
    %143 = arith.addf %138, %142 : vector<32x128xf32>
    %144 = vector.extract_strided_slice %19 {offsets = [0, 145], sizes = [32, 128], strides = [1, 1]} : vector<32x384xf32> to vector<32x128xf32>
    %c1_i32_45 = arith.constant 1 : i32
    %145 = vector.broadcast %c1_i32_45 : i32 to vector<1x128xi32>
    %146 = arith.addi %36, %145 : vector<1x128xi32>
    %c0_i32_46 = arith.constant 0 : i32
    %147 = vector.broadcast %c0_i32_46 : i32 to vector<1x128xi32>
    %148 = arith.cmpi sge, %146, %147 : vector<1x128xi32>
    %c1_i32_47 = arith.constant 1 : i32
    %149 = vector.broadcast %c1_i32_47 : i32 to vector<1x128xi32>
    %150 = arith.addi %36, %149 : vector<1x128xi32>
    %c16_i32_48 = arith.constant 16 : i32
    %151 = vector.broadcast %c16_i32_48 : i32 to vector<1x128xi32>
    %152 = arith.cmpi slt, %150, %151 : vector<1x128xi32>
    %153 = arith.andi %148, %152 : vector<1x128xi1>
    %cst_49 = arith.constant 0.000000e+00 : f32
    %154 = vector.shape_cast %153 : vector<1x128xi1> to vector<1x128xi1>
    %155 = vector.broadcast %154 : vector<1x128xi1> to vector<32x128xi1>
    %156 = vector.broadcast %cst_49 : f32 to vector<32x128xf32>
    %157 = arith.select %155, %144, %156 : vector<32x128xi1>, vector<32x128xf32>
    %158 = vector.extract_strided_slice %37 {offsets = [0, 8], sizes = [32, 1], strides = [1, 1]} : vector<32x9xf32> to vector<32x1xf32>
    %159 = vector.broadcast %158 : vector<32x1xf32> to vector<32x128xf32>
    %160 = arith.mulf %157, %159 : vector<32x128xf32>
    %161 = arith.addf %143, %160 : vector<32x128xf32>
    %c0_50 = arith.constant 0 : index
    %c0_51 = arith.constant 0 : index
    %162 = vector.load %arg6[%c0_50, %c0_51] : memref<32x1xf32, #tpu.memory_space<vmem>>, vector<32x1xf32>
    %163 = vector.broadcast %162 : vector<32x1xf32> to vector<32x128xf32>
    %164 = arith.addf %161, %163 : vector<32x128xf32>
    %cst_52 = arith.constant 0.000000e+00 : f32
    %cst_53 = arith.constant 6.000000e+00 : f32
    %165 = vector.broadcast %cst_52 : f32 to vector<32x128xf32>
    %166 = arith.maximumf %165, %164 : vector<32x128xf32>
    %167 = vector.broadcast %cst_53 : f32 to vector<32x128xf32>
    %168 = arith.minimumf %167, %166 : vector<32x128xf32>
    %c0_54 = arith.constant 0 : index
    %c0_55 = arith.constant 0 : index
    %169 = vector.load %arg7[%c0_54, %c0_55] : memref<8x32xf32, #tpu.memory_space<vmem>>, vector<8x32xf32>
    %cst_56 = arith.constant dense<0.000000e+00> : vector<8x128xf32>
    %170 = tpu.matmul %169, %168, %cst_56 {dimension_numbers = #tpu.dot_dimension_numbers<[1], [0], [0], [1], [0, 0, 1, 1], [], []>} : vector<8x32xf32>, vector<32x128xf32>, vector<8x128xf32> -> vector<8x128xf32>
    %c128_i32_57 = arith.constant 128 : i32
    %171 = arith.muli %arg1, %c128_i32_57 : i32
    %172 = tpu.assume_multiple %171, 128 : i32
    %c0_58 = arith.constant 0 : index
    %c0_59 = arith.constant 0 : index
    %173 = arith.index_cast %172 : i32 to index
    %174 = vector.load %arg2[%c0_58, %c0_59, %173] : memref<1x8x256xf32, #tpu.memory_space<vmem>>, vector<1x8x128xf32>
    %175 = vector.shape_cast %174 : vector<1x8x128xf32> to vector<8x128xf32>
    %c0_60 = arith.constant 0 : index
    %c0_61 = arith.constant 0 : index
    %176 = vector.load %arg8[%c0_60, %c0_61] : memref<8x1xf32, #tpu.memory_space<vmem>>, vector<8x1xf32>
    %177 = vector.broadcast %176 : vector<8x1xf32> to vector<8x128xf32>
    %178 = arith.addf %170, %177 : vector<8x128xf32>
    %179 = arith.addf %178, %175 : vector<8x128xf32>
    %c0_62 = arith.constant 0 : index
    %c0_63 = arith.constant 0 : index
    %c0_64 = arith.constant 0 : index
    %180 = vector.load %arg9[%c0_62, %c0_63, %c0_64] : memref<1x8x128xf32, #tpu.memory_space<vmem>>, vector<1x8x128xf32>
    %181 = vector.shape_cast %180 : vector<1x8x128xf32> to vector<8x128xf32>
    %182 = vector.shape_cast %179 : vector<8x128xf32> to vector<1x8x128xf32>
    tpu.vector_store %arg9[%c0_62, %c0_63, %c0_64], %182 {strides = array<i32>} : memref<1x8x128xf32, #tpu.memory_space<vmem>>, vector<1x8x128xf32>,
    return
  }
  func.func @transform_0(%arg0: i32, %arg1: i32) -> (i32, i32, i32) {
    %c0_i32 = arith.constant 0 : i32
    %c0_i32_0 = arith.constant 0 : i32
    %c0_i32_1 = arith.constant 0 : i32
    return %arg0, %c0_i32, %c0_i32_0 : i32, i32, i32
  }
  func.func @transform_1(%arg0: i32, %arg1: i32) -> (i32, i32) {
    %c0_i32 = arith.constant 0 : i32
    %c0_i32_0 = arith.constant 0 : i32
    %c0_i32_1 = arith.constant 0 : i32
    return %c0_i32, %c0_i32_0 : i32, i32
  }
  func.func @transform_2(%arg0: i32, %arg1: i32) -> (i32, i32) {
    %c0_i32 = arith.constant 0 : i32
    %c0_i32_0 = arith.constant 0 : i32
    %c0_i32_1 = arith.constant 0 : i32
    return %c0_i32, %c0_i32_0 : i32, i32
  }
  func.func @transform_3(%arg0: i32, %arg1: i32) -> (i32, i32) {
    %c0_i32 = arith.constant 0 : i32
    %c0_i32_0 = arith.constant 0 : i32
    %c0_i32_1 = arith.constant 0 : i32
    return %c0_i32, %c0_i32_0 : i32, i32
  }
  func.func @transform_4(%arg0: i32, %arg1: i32) -> (i32, i32) {
    %c0_i32 = arith.constant 0 : i32
    %c0_i32_0 = arith.constant 0 : i32
    %c0_i32_1 = arith.constant 0 : i32
    return %c0_i32, %c0_i32_0 : i32, i32
  }
  func.func @transform_5(%arg0: i32, %arg1: i32) -> (i32, i32) {
    %c0_i32 = arith.constant 0 : i32
    %c0_i32_0 = arith.constant 0 : i32
    %c0_i32_1 = arith.constant 0 : i32
    return %c0_i32, %c0_i32_0 : i32, i32
  }
  func.func @transform_6(%arg0: i32, %arg1: i32) -> (i32, i32) {
    %c0_i32 = arith.constant 0 : i32
    %c0_i32_0 = arith.constant 0 : i32
    %c0_i32_1 = arith.constant 0 : i32
    return %c0_i32, %c0_i32_0 : i32, i32
  }
  func.func @transform_7(%arg0: i32, %arg1: i32) -> (i32, i32, i32) {
    %c0_i32 = arith.constant 0 : i32
    %c0_i32_0 = arith.constant 0 : i32
    return %arg0, %c0_i32, %arg1 : i32, i32, i32
  }
}

</mosaic_0001>

<llo_original>
// kernel: squeeze.4
$region0: #{squeeze.4}
  %s0 = inlined_call_operand.vmem [shape: f32[32,3,3], index: 0, kind: input, shape index: {}]
  %s1 = inlined_call_operand.vmem [shape: f32[32,9], index: 1, kind: output, shape index: {}]
  $region1: #{squeeze.4} parent=0
    #allocation0 [shape = 'u8[12288]{0}', space=vmem, size = 0x3000, scoped, tag = 'scoped mem for input reshape']
    %s3 = sshllo.u32 0, 4
    %s4 = smul.addr 4, 2
    %s5 = scalar_lea.vmem %s0, %s4
    %v6 = vld [vmem:[%s5] sm:%s3]
    %s7 = scalar_lea.vmem [#allocation0], 16
    %8 = vst [vmem:[%s7] sm:%s3] %v6
    %s9 = scalar_lea.vmem %s0, 4
    %v10 = vld [vmem:[%s9] sm:%s3]
    %s11 = scalar_lea.vmem [#allocation0], 8
    %12 = vst [vmem:[%s11] sm:%s3] %v10
    %v13 = vld [vmem:[%s0] sm:%s3]
    %14 = vst [vmem:[#allocation0] sm:%s3] %v13
    %v15 = vld [vmem:[#allocation0] sm:$0x7]
    %vm16 = vcmask 261120
    %17 = vst.msk [vmem:[%s1] sm:$0x7] %vm16, %v15
    %s18 = scalar_lea.vmem [#allocation0], 8
    %v19 = vld [vmem:[%s18] sm:$0x7]
    %vm20 = vcmask 261120
    %s21 = scalar_lea.vmem %s1, 3
    %22 = vst.msk [vmem:[%s21] sm:$0x7] %vm20, %v19
    %s23 = scalar_lea.vmem [#allocation0], 16
    %v24 = vld [vmem:[%s23] sm:$0x7]
    %vm25 = vcmask 261120
    %s26 = scalar_lea.vmem %s1, 6
    %27 = vst.msk [vmem:[%s26] sm:$0x7] %vm25, %v24

// kernel: inverted_block_forward.1
$region0: #{inverted_block_forward.1}
  #allocation0 [shape = 'u32[]', space=smem, size = 0x4, offset = 0x4, fixed_abs, tag = 'smem constant byte address 0x4 - core index']
  #allocation1 [shape = 'u32[144,128]{1,0:T(1,128)}', space=vmem, size = 0x12000, scoped, tag = 'internal scratch']
  #allocation2 [shape = 'f32[32,512]{1,0:T(8,128)}', space=vmem, size = 0x10000, scoped, tag = 'scratch operand']
  %s0 = inlined_call_operand.vmem [shape: f32[2,8,256], index: 0, kind: input, shape index: {}]
  %s1 = inlined_call_operand.vmem [shape: f32[32,8], index: 1, kind: input, shape index: {}]
  %s2 = inlined_call_operand.vmem [shape: f32[32,1], index: 2, kind: input, shape index: {}]
  %s3 = inlined_call_operand.vmem [shape: f32[32,9], index: 3, kind: input, shape index: {}]
  %s4 = inlined_call_operand.vmem [shape: f32[32,1], index: 4, kind: input, shape index: {}]
  %s5 = inlined_call_operand.vmem [shape: f32[8,32], index: 5, kind: input, shape index: {}]
  %s6 = inlined_call_operand.vmem [shape: f32[8,1], index: 6, kind: input, shape index: {}]
  %s7 = inlined_call_operand.vmem [shape: f32[2,8,256], index: 7, kind: output, shape index: {}]
  %s8 = sld [smem:[#allocation0]]
  $region61: #{inverted_block_forward.1} parent=0
    _
  %s10 = ssub.s32 1, %s8
  %s11 = scalar_select 0, %s10, %s8
  loop: start=0, step=1, limit=6
  $region2: #{inverted_block_forward.1} parent=0 // loop_pre_header
    _
  $region3: #{inverted_block_forward.1} parent=0 // loop_header
    %s13 = sphi 0, %s17
    %p14 = scmp.ge.s32.totalorder %s13, 6
    %s20 = sphi 0, %s32
    %s21 = sphi 0, %s28
    %s22 = sphi 0, %s20
    %s23 = sphi 0, %s21
    %s24 = sphi 0, %s22
    %s25 = sphi 0, %s23
    %s35 = sphi 0, %s37
    %s38 = sphi 0, %s35
    %s39 = sphi 0, %s38
    %s55 = sphi 0, %s39
    %s59 = sphi 0, %s59
    %s61 = sphi 0, %s59
    %s62 = sphi 0, %s61
    %s76 = sphi 0, %s62
    %s80 = sphi 0, %s80
    %s82 = sphi 0, %s80
    %s83 = sphi 0, %s82
    %s97 = sphi 0, %s83
    %s101 = sphi 0, %s101
    %s103 = sphi 0, %s101
    %s104 = sphi 0, %s103
    %s118 = sphi 0, %s104
    %s122 = sphi 0, %s122
    %s124 = sphi 0, %s122
    %s125 = sphi 0, %s124
    %s139 = sphi 0, %s125
    %s143 = sphi 0, %s143
    %s145 = sphi 0, %s143
    %s146 = sphi 0, %s145
    %s160 = sphi 0, %s146
    %s164 = sphi 0, %s164
    %s166 = sphi 0, %s164
    %s167 = sphi 0, %s166
    %s181 = sphi 0, %s167
    %s189 = sphi 0, %s191
    %s192 = sphi 0, %s189
    %s193 = sphi 0, %s192
    %s209 = sphi 0, %s193
  $region4: #{inverted_block_forward.1} parent=0 // loop_header_branch
    %16 = sbr.rel (%p14) target = $region8
  $region5: #{inverted_block_forward.1} parent=0 // loop_body
    %s18 = ssub.s32 %s13, 1
    %s19 = ssub.s32 %s13, 2
    %s26 = sadd.s32 1, %s21
    %p27 = scmp.ge.s32.totalorder %s26, 2
    %s28 = scalar_select %p27, 0, %s26
    %s29 = sadd.s32 1, %s20
    %s30 = scalar_select %p27, %s29, %s20
    %p31 = scmp.ge.s32.totalorder %s30, 2
    %s32 = scalar_select %p31, 0, %s30
    %s33 = ssub.s32 %s20, %s32
    %p34 = scmp.eq.s32.totalorder %s33, 0
    %s36 = sadd.s32 %s35, 1
    %s37 = scalar_select %p34, %s35, %s36
    %p40 = pneg %p34
    %p41 = scmp.eq.s32.totalorder %s13, 3
    %p42 = por %p40, %p41
    %p43 = scmp.ne.s32.totalorder %s35, %s38
    %p44 = scmp.eq.s32.totalorder %s13, 0
    %p45 = por %p43, %p44
    %p46 = scmp.ne.s32.totalorder %s35, %s38
    %p47 = scmp.eq.s32.totalorder %s18, 3
    %p48 = por %p46, %p47
    %p49 = scmp.ne.s32.totalorder %s38, %s39
    %p50 = scmp.eq.s32.totalorder %s18, 0
    %p51 = por %p49, %p50
    %p52 = scmp.ne.s32.totalorder %s38, %s39
    %p53 = scmp.eq.s32.totalorder %s19, 3
    %p54 = por %p52, %p53
    %p56 = scmp.ne.s32.totalorder %s39, %s55
    %p57 = scmp.eq.s32.totalorder %s19, 0
    %p58 = por %p56, %p57
    %s60 = sadd.s32 %s59, 1
    %p63 = scmp.eq.s32.totalorder %s13, 3
    %p64 = scmp.ne.s32.totalorder %s59, %s61
    %p65 = scmp.eq.s32.totalorder %s13, 0
    %p66 = por %p64, %p65
    %p67 = scmp.ne.s32.totalorder %s59, %s61
    %p68 = scmp.eq.s32.totalorder %s18, 3
    %p69 = por %p67, %p68
    %p70 = scmp.ne.s32.totalorder %s61, %s62
    %p71 = scmp.eq.s32.totalorder %s18, 0
    %p72 = por %p70, %p71
    %p73 = scmp.ne.s32.totalorder %s61, %s62
    %p74 = scmp.eq.s32.totalorder %s19, 3
    %p75 = por %p73, %p74
    %p77 = scmp.ne.s32.totalorder %s62, %s76
    %p78 = scmp.eq.s32.totalorder %s19, 0
    %p79 = por %p77, %p78
    %s81 = sadd.s32 %s80, 1
    %p84 = scmp.eq.s32.totalorder %s13, 3
    %p85 = scmp.ne.s32.totalorder %s80, %s82
    %p86 = scmp.eq.s32.totalorder %s13, 0
    %p87 = por %p85, %p86
    %p88 = scmp.ne.s32.totalorder %s80, %s82
    %p89 = scmp.eq.s32.totalorder %s18, 3
    %p90 = por %p88, %p89
    %p91 = scmp.ne.s32.totalorder %s82, %s83
    %p92 = scmp.eq.s32.totalorder %s18, 0
    %p93 = por %p91, %p92
    %p94 = scmp.ne.s32.totalorder %s82, %s83
    %p95 = scmp.eq.s32.totalorder %s19, 3
    %p96 = por %p94, %p95
    %p98 = scmp.ne.s32.totalorder %s83, %s97
    %p99 = scmp.eq.s32.totalorder %s19, 0
    %p100 = por %p98, %p99
    %s102 = sadd.s32 %s101, 1
    %p105 = scmp.eq.s32.totalorder %s13, 3
    %p106 = scmp.ne.s32.totalorder %s101, %s103
    %p107 = scmp.eq.s32.totalorder %s13, 0
    %p108 = por %p106, %p107
    %p109 = scmp.ne.s32.totalorder %s101, %s103
    %p110 = scmp.eq.s32.totalorder %s18, 3
    %p111 = por %p109, %p110
    %p112 = scmp.ne.s32.totalorder %s103, %s104
    %p113 = scmp.eq.s32.totalorder %s18, 0
    %p114 = por %p112, %p113
    %p115 = scmp.ne.s32.totalorder %s103, %s104
    %p116 = scmp.eq.s32.totalorder %s19, 3
    %p117 = por %p115, %p116
    %p119 = scmp.ne.s32.totalorder %s104, %s118
    %p120 = scmp.eq.s32.totalorder %s19, 0
    %p121 = por %p119, %p120
    %s123 = sadd.s32 %s122, 1
    %p126 = scmp.eq.s32.totalorder %s13, 3
    %p127 = scmp.ne.s32.totalorder %s122, %s124
    %p128 = scmp.eq.s32.totalorder %s13, 0
    %p129 = por %p127, %p128
    %p130 = scmp.ne.s32.totalorder %s122, %s124
    %p131 = scmp.eq.s32.totalorder %s18, 3
    %p132 = por %p130, %p131
    %p133 = scmp.ne.s32.totalorder %s124, %s125
    %p134 = scmp.eq.s32.totalorder %s18, 0
    %p135 = por %p133, %p134
    %p136 = scmp.ne.s32.totalorder %s124, %s125
    %p137 = scmp.eq.s32.totalorder %s19, 3
    %p138 = por %p136, %p137
    %p140 = scmp.ne.s32.totalorder %s125, %s139
    %p141 = scmp.eq.s32.totalorder %s19, 0
    %p142 = por %p140, %p141
    %s144 = sadd.s32 %s143, 1
    %p147 = scmp.eq.s32.totalorder %s13, 3
    %p148 = scmp.ne.s32.totalorder %s143, %s145
    %p149 = scmp.eq.s32.totalorder %s13, 0
    %p150 = por %p148, %p149
    %p151 = scmp.ne.s32.totalorder %s143, %s145
    %p152 = scmp.eq.s32.totalorder %s18, 3
    %p153 = por %p151, %p152
    %p154 = scmp.ne.s32.totalorder %s145, %s146
    %p155 = scmp.eq.s32.totalorder %s18, 0
    %p156 = por %p154, %p155
    %p157 = scmp.ne.s32.totalorder %s145, %s146
    %p158 = scmp.eq.s32.totalorder %s19, 3
    %p159 = por %p157, %p158
    %p161 = scmp.ne.s32.totalorder %s146, %s160
    %p162 = scmp.eq.s32.totalorder %s19, 0
    %p163 = por %p161, %p162
    %s165 = sadd.s32 %s164, 1
    %p168 = scmp.eq.s32.totalorder %s13, 3
    %p169 = scmp.ne.s32.totalorder %s164, %s166
    %p170 = scmp.eq.s32.totalorder %s13, 0
    %p171 = por %p169, %p170
    %p172 = scmp.ne.s32.totalorder %s164, %s166
    %p173 = scmp.eq.s32.totalorder %s18, 3
    %p174 = por %p172, %p173
    %p175 = scmp.ne.s32.totalorder %s166, %s167
    %p176 = scmp.eq.s32.totalorder %s18, 0
    %p177 = por %p175, %p176
    %p178 = scmp.ne.s32.totalorder %s166, %s167
    %p179 = scmp.eq.s32.totalorder %s19, 3
    %p180 = por %p178, %p179
    %p182 = scmp.ne.s32.totalorder %s167, %s181
    %p183 = scmp.eq.s32.totalorder %s19, 0
    %p184 = por %p182, %p183
    %s185 = ssub.s32 %s20, %s32
    %s186 = ssub.s32 %s21, %s28
    %s187 = sor.u32 %s185, %s186
    %p188 = scmp.eq.s32.totalorder %s187, 0
    %s190 = sadd.s32 %s189, 1
    %s191 = scalar_select %p188, %s189, %s190
    %p194 = pneg %p188
    %p195 = scmp.eq.s32.totalorder %s13, 3
    %p196 = por %p194, %p195
    %p197 = scmp.ne.s32.totalorder %s189, %s192
    %p198 = scmp.eq.s32.totalorder %s13, 0
    %p199 = por %p197, %p198
    %p200 = scmp.ne.s32.totalorder %s189, %s192
    %p201 = scmp.eq.s32.totalorder %s18, 3
    %p202 = por %p200, %p201
    %p203 = scmp.ne.s32.totalorder %s192, %s193
    %p204 = scmp.eq.s32.totalorder %s18, 0
    %p205 = por %p203, %p204
    %p206 = scmp.ne.s32.totalorder %s192, %s193
    %p207 = scmp.eq.s32.totalorder %s19, 3
    %p208 = por %p206, %p207
    %p210 = scmp.ne.s32.totalorder %s193, %s209
    %p211 = scmp.eq.s32.totalorder %s19, 0
    %p212 = por %p210, %p211
    %p213 = scmp.le.s32.totalorder 1, %s13
    %p214 = scmp.lt.s32.totalorder %s13, 5
    %p215 = pnand %p213, %p214
    %p216 = pneg %p215
    // Predicated region
    $region9: #{inverted_block_forward.1} parent=5 // pred_check
      _
    $region10: #{inverted_block_forward.1} parent=5 // pred_check_branch
      %218 = sbr.rel (%p215) target = $region12
    $region11: #{inverted_block_forward.1} parent=5 // pred_region
      %s219 = ssub.s32 %s13, 1
      // Predicated region
      $region13: #{inverted_block_forward.1} parent=11 // pred_check
        %p220 = pneg %p72
      $region14: #{inverted_block_forward.1} parent=11 // pred_check_branch
        %222 = sbr.rel (%p220) target = $region16
      $region15: #{inverted_block_forward.1} parent=11 // pred_region
        _
      $region16: #{inverted_block_forward.1} parent=11 // pred_fallthru
        _
      // Predicated region
      $region17: #{inverted_block_forward.1} parent=11 // pred_check
        %p223 = pneg %p93
      $region18: #{inverted_block_forward.1} parent=11 // pred_check_branch
        %225 = sbr.rel (%p223) target = $region20
      $region19: #{inverted_block_forward.1} parent=11 // pred_region
        _
      $region20: #{inverted_block_forward.1} parent=11 // pred_fallthru
        _
      // Predicated region
      $region21: #{inverted_block_forward.1} parent=11 // pred_check
        %p226 = pneg %p114
      $region22: #{inverted_block_forward.1} parent=11 // pred_check_branch
        %228 = sbr.rel (%p226) target = $region24
      $region23: #{inverted_block_forward.1} parent=11 // pred_region
        _
      $region24: #{inverted_block_forward.1} parent=11 // pred_fallthru
        _
      // Predicated region
      $region25: #{inverted_block_forward.1} parent=11 // pred_check
        %p229 = pneg %p135
      $region26: #{inverted_block_forward.1} parent=11 // pred_check_branch
        %231 = sbr.rel (%p229) target = $region28
      $region27: #{inverted_block_forward.1} parent=11 // pred_region
        _
      $region28: #{inverted_block_forward.1} parent=11 // pred_fallthru
        _
      // Predicated region
      $region29: #{inverted_block_forward.1} parent=11 // pred_check
        %p232 = pneg %p156
      $region30: #{inverted_block_forward.1} parent=11 // pred_check_branch
        %234 = sbr.rel (%p232) target = $region32
      $region31: #{inverted_block_forward.1} parent=11 // pred_region
        _
      $region32: #{inverted_block_forward.1} parent=11 // pred_fallthru
        _
      // Predicated region
      $region33: #{inverted_block_forward.1} parent=11 // pred_check
        %p235 = pneg %p177
      $region34: #{inverted_block_forward.1} parent=11 // pred_check_branch
        %237 = sbr.rel (%p235) target = $region36
      $region35: #{inverted_block_forward.1} parent=11 // pred_region
        _
      $region36: #{inverted_block_forward.1} parent=11 // pred_fallthru
        _
    $region12: #{inverted_block_forward.1} parent=5 // pred_fallthru
      _
    %p238 = scmp.lt.s32.totalorder %s13, 4
    // Predicated region
    $region37: #{inverted_block_forward.1} parent=5 // pred_check
      %p239 = pneg %p238
    $region38: #{inverted_block_forward.1} parent=5 // pred_check_branch
      %241 = sbr.rel (%p239) target = $region40
    $region39: #{inverted_block_forward.1} parent=5 // pred_region
      // Predicated region
      $region41: #{inverted_block_forward.1} parent=39 // pred_check
        %p242 = pneg %p45
      $region42: #{inverted_block_forward.1} parent=39 // pred_check_branch
        %244 = sbr.rel (%p242) target = $region44
      $region43: #{inverted_block_forward.1} parent=39 // pred_region
        %p245 = scmp.lt.s32.totalorder %s20, 1
        %s246 = scalar_select %p245, %s20, 1
        %s247 = smul.addr %s246, 2
        %s248 = smul.addr %s247, 8
        %s249 = scalar_lea.vmem %s0, %s248
      $region44: #{inverted_block_forward.1} parent=39 // pred_fallthru
        _
    $region40: #{inverted_block_forward.1} parent=5 // pred_fallthru
      _
    %p250 = scmp.le.s32.totalorder 1, %s13
    %p251 = scmp.lt.s32.totalorder %s13, 5
    %p252 = pnand %p250, %p251
    %p253 = pneg %p252
    // Predicated region
    $region45: #{inverted_block_forward.1} parent=5 // pred_check
      _
    $region46: #{inverted_block_forward.1} parent=5 // pred_check_branch
      %255 = sbr.rel (%p252) target = $region48
    $region47: #{inverted_block_forward.1} parent=5 // pred_region
      %s256 = ssub.s32 %s13, 1
      %p257 = scmp.lt.s32.totalorder %s22, 1
      %s258 = scalar_select %p257, %s22, 1
      %s259 = smul.addr %s258, 2
      %s260 = smul.addr %s259, 8
      %s261 = scalar_lea.vmem %s0, %s260
      %p262 = pneg %p51
      %p263 = pneg %p48
      %p264 = pneg %p72
      %p265 = pneg %p69
      %p266 = pneg %p93
      %p267 = pneg %p90
      %p268 = pneg %p114
      %p269 = pneg %p111
      %p270 = pneg %p135
      %p271 = pneg %p132
      %p272 = pneg %p156
      %p273 = pneg %p153
      %p274 = pneg %p177
      %p275 = pneg %p174
      %p276 = pneg %p205
      %p277 = pneg %p202
      %p278 = scmp.lt.s32.totalorder %s22, 1
      %s279 = scalar_select %p278, %s22, 1
      %p280 = scmp.lt.s32.totalorder %s23, 1
      %s281 = scalar_select %p280, %s23, 1
      %s282 = smul.addr %s279, 2
      %s283 = sadd.s32 %s281, %s282
      %s284 = smul.addr %s283, 8
      %s285 = scalar_lea.vmem %s7, %s284
      %p286 = scmp.lt.s32.totalorder %s22, 1
      %s287 = scalar_select %p286, %s22, 1
      %s288 = smul.addr %s287, 2
      %s289 = smul.addr %s288, 8
      %s290 = scalar_lea.vmem %s0, %s289
      %p291 = scmp.lt.s32.totalorder %s22, 1
      %s292 = scalar_select %p291, %s22, 1
      %p293 = scmp.lt.s32.totalorder %s23, 1
      %s294 = scalar_select %p293, %s23, 1
      %s295 = smul.addr %s292, 2
      %s296 = sadd.s32 %s294, %s295
      %s297 = smul.addr %s296, 8
      %s298 = scalar_lea.vmem %s7, %s297
      %v299 = vld [vmem:[%s290] sm:$0xff]
      %v300 = vld [vmem:[%s290 + $0x8] sm:$0xff]
      %v301 = vld [vmem:[%s1] sm:$0xff]
      %v302 = vld [vmem:[%s1 + $0x8] sm:$0xff]
      %v303 = vld [vmem:[%s1 + $0x10] sm:$0xff]
      %v304 = vld [vmem:[%s1 + $0x18] sm:$0xff]
      %v305 = vld [vmem:[%s2] sm:$0xff]
      %v306 = vld [vmem:[%s2 + $0x8] sm:$0xff]
      %v307 = vld [vmem:[%s2 + $0x10] sm:$0xff]
      %v308 = vld [vmem:[%s2 + $0x18] sm:$0xff]
      %310 = vset.pattern.permute.xlu0 0
      %311 = vperm.xlu0 %310, %v305
      %v312 = vpop.permute.xlu0 %311
      %315 = vset.pattern.permute.xlu0 0
      %316 = vperm.xlu0 %315, %v306
      %v317 = vpop.permute.xlu0 %316
      %320 = vset.pattern.permute.xlu0 0
      %321 = vperm.xlu0 %320, %v307
      %v322 = vpop.permute.xlu0 %321
      %325 = vset.pattern.permute.xlu0 0
      %326 = vperm.xlu0 %325, %v308
      %v327 = vpop.permute.xlu0 %326
      %vm329 = vcmask 64512
      %v331 = vsel %vm329, %v301, 0
      %v334 = vsel %vm329, %v302, 0
      %v337 = vsel %vm329, %v303, 0
      %v340 = vsel %vm329, %v304, 0
      %342 = vmatprep.subr.mxu0 %v300
      %343 = vmatpush1.msra.mxu0 %v299
      %344 = vmatprep.subr.mxu0 0.0
      %345 = vmatpush1.msra.mxu0 0.0
      %346 = vmatprep.subr.mxu0 0.0
      %347 = vmatpush1.msra.mxu0 0.0
      %348 = vmatprep.subr.mxu0 0.0
      %349 = vmatpush1.msra.mxu0 0.0
      %350 = vmatprep.subr.mxu0 0.0
      %351 = vmatpush1.msra.mxu0 0.0
      %352 = vmatprep.subr.mxu0 0.0
      %353 = vmatpush1.msra.mxu0 0.0
      %354 = vmatprep.subr.mxu0 0.0
      %355 = vmatpush1.msra.mxu0 0.0
      %356 = vmatprep.subr.mxu0 0.0
      %357 = vmatpush1.msra.mxu0 0.0
      %358 = vmatprep.subr.mxu0 0.0
      %359 = vmatpush1.msra.mxu0 0.0
      %360 = vmatprep.subr.mxu0 0.0
      %361 = vmatpush1.msra.mxu0 0.0
      %362 = vmatprep.subr.mxu0 0.0
      %363 = vmatpush1.msra.mxu0 0.0
      %364 = vmatprep.subr.mxu0 0.0
      %365 = vmatpush1.msra.mxu0 0.0
      %366 = vmatprep.subr.mxu0 0.0
      %367 = vmatpush1.msra.mxu0 0.0
      %368 = vmatprep.subr.mxu0 0.0
      %369 = vmatpush1.msra.mxu0 0.0
      %370 = vmatprep.subr.mxu0 0.0
      %371 = vmatpush1.msra.mxu0 0.0
      %372 = vmatprep.subr.mxu0 0.0
      %373 = vmatpush1.msra.mxu0 0.0
      %374 = vmatprep.subr.mxu0 0.0
      %375 = vmatpush1.msra.mxu0 0.0
      %376 = vmatprep.subr.mxu0 0.0
      %377 = vmatpush1.msra.mxu0 0.0
      %378 = vmatprep.subr.mxu0 0.0
      %379 = vmatpush1.msra.mxu0 0.0
      %380 = vmatprep.subr.mxu0 0.0
      %381 = vmatpush1.msra.mxu0 0.0
      %382 = vmatprep.subr.mxu0 0.0
      %383 = vmatpush1.msra.mxu0 0.0
      %384 = vmatprep.subr.mxu0 0.0
      %385 = vmatpush1.msra.mxu0 0.0
      %386 = vmatprep.subr.mxu0 0.0
      %387 = vmatpush1.msra.mxu0 0.0
      %388 = vmatprep.subr.mxu0 0.0
      %389 = vmatpush1.msra.mxu0 0.0
      %390 = vmatprep.subr.mxu0 0.0
      %391 = vmatpush1.msra.mxu0 0.0
      %392 = vmatprep.subr.mxu0 0.0
      %393 = vmatpush1.msra.mxu0 0.0
      %394 = vmatprep.subr.mxu0 0.0
      %395 = vmatpush1.msra.mxu0 0.0
      %396 = vmatprep.subr.mxu0 0.0
      %397 = vmatpush1.msra.mxu0 0.0
      %398 = vmatprep.subr.mxu0 0.0
      %399 = vmatpush1.msra.mxu0 0.0
      %400 = vmatprep.subr.mxu0 0.0
      %401 = vmatpush1.msra.mxu0 0.0
      %402 = vmatprep.subr.mxu0 0.0
      %403 = vmatpush1.msra.mxu0 0.0
      %404 = vmatprep.subr.mxu0 0.0
      %405 = vmatpush1.msra.mxu0 0.0
      %406 = vmatprep.mubr.f32.mxu0 0.0
      %407 = vmatmul.mubr.f32.gmra.mrb[0].mxu0 %v331
      %v408 = vpop.f32.mrb[0].mxu0
      %v409 = vadd.f32 %v312, %v408
      %v410 = vpop.f32.mrb[0].mxu0
      %v411 = vadd.f32 %v312, %v410
      %412 = vmatprep.mubr.f32.mxu0 0.0
      %413 = vmatmul.mubr.f32.gmra.mrb[0].mxu0 %v334
      %v414 = vpop.f32.mrb[0].mxu0
      %v415 = vadd.f32 %v317, %v414
      %v416 = vpop.f32.mrb[0].mxu0
      %v417 = vadd.f32 %v317, %v416
      %418 = vmatprep.mubr.f32.mxu0 0.0
      %419 = vmatmul.mubr.f32.gmra.mrb[0].mxu0 %v337
      %v420 = vpop.f32.mrb[0].mxu0
      %v421 = vadd.f32 %v322, %v420
      %v422 = vpop.f32.mrb[0].mxu0
      %v423 = vadd.f32 %v322, %v422
      %424 = vmatprep.mubr.f32.mxu0 0.0
      %425 = vmatmul.mubr.f32.gmra.mrb[0].mxu0 %v340
      %v426 = vpop.f32.mrb[0].mxu0
      %v427 = vadd.f32 %v327, %v426
      %v428 = vpop.f32.mrb[0].mxu0
      %v429 = vadd.f32 %v327, %v428
      %430 = vdwg.mxu0
      %v431 = vmax.f32 %v409, 0.0
      %v432 = vmax.f32 %v411, 0.0
      %v433 = vmax.f32 %v415, 0.0
      %v434 = vmax.f32 %v417, 0.0
      %v435 = vmax.f32 %v421, 0.0
      %v436 = vmax.f32 %v423, 0.0
      %v437 = vmax.f32 %v427, 0.0
      %v438 = vmax.f32 %v429, 0.0
      %v439 = vmin.f32 %v431, 6.0
      %v440 = vmin.f32 %v432, 6.0
      %v441 = vmin.f32 %v433, 6.0
      %v442 = vmin.f32 %v434, 6.0
      %v443 = vmin.f32 %v435, 6.0
      %v444 = vmin.f32 %v436, 6.0
      %v445 = vmin.f32 %v437, 6.0
      %v446 = vmin.f32 %v438, 6.0
      %447 = vst [vmem:[#allocation2] sm:$0xff] 0.0
      %448 = vst [vmem:[#allocation2 + $0x20] sm:$0xff] 0.0
      %449 = vst [vmem:[#allocation2 + $0x40] sm:$0xff] 0.0
      %450 = vst [vmem:[#allocation2 + $0x60] sm:$0xff] 0.0
      %451 = vst [vmem:[#allocation2 + $0x8] sm:$0xff] %v439
      %452 = vst [vmem:[#allocation2 + $0x10] sm:$0xff] %v440
      %453 = vst [vmem:[#allocation2 + $0x28] sm:$0xff] %v441
      %454 = vst [vmem:[#allocation2 + $0x30] sm:$0xff] %v442
      %455 = vst [vmem:[#allocation2 + $0x48] sm:$0xff] %v443
      %456 = vst [vmem:[#allocation2 + $0x50] sm:$0xff] %v444
      %457 = vst [vmem:[#allocation2 + $0x68] sm:$0xff] %v445
      %458 = vst [vmem:[#allocation2 + $0x70] sm:$0xff] %v446
      %459 = vst [vmem:[#allocation2 + $0x18] sm:$0xff] 0.0
      %460 = vst [vmem:[#allocation2 + $0x38] sm:$0xff] 0.0
      %461 = vst [vmem:[#allocation2 + $0x58] sm:$0xff] 0.0
      %462 = vst [vmem:[#allocation2 + $0x78] sm:$0xff] 0.0
      %s463 = smul.u32 %s23, 128
      %s464 = sshra.s32 %s463, 7
      %s465 = sand.u32 %s463, 127
      %s466 = smul.addr %s464, 8
      %s467 = scalar_lea.vmem [#allocation2], %s466
      %v468 = vld [vmem:[%s467] sm:$0xff]
      %v469 = vld [vmem:[%s467 + $0x8] sm:$0xff]
      %v470 = vld [vmem:[%s467 + $0x10] sm:$0xff]
      %v471 = vld [vmem:[%s467 + $0x20] sm:$0xff]
      %v472 = vld [vmem:[%s467 + $0x28] sm:$0xff]
      %v473 = vld [vmem:[%s467 + $0x30] sm:$0xff]
      %v474 = vld [vmem:[%s467 + $0x40] sm:$0xff]
      %v475 = vld [vmem:[%s467 + $0x48] sm:$0xff]
      %v476 = vld [vmem:[%s467 + $0x50] sm:$0xff]
      %v477 = vld [vmem:[%s467 + $0x60] sm:$0xff]
      %v478 = vld [vmem:[%s467 + $0x68] sm:$0xff]
      %v479 = vld [vmem:[%s467 + $0x70] sm:$0xff]
      %v480 = vlaneseq
      %v481 = vand.u32 %v480, 127
      %vm482 = vcmp.lt.s32.totalorder %v481, 0
      %v483 = vsub.s32 0, %v481
      %v484 = vsel %vm482, %v483, %v481
      %v485 = vshrl.u32 %v484, 4
      %v486 = vand.u32 %v484, 15
      %v487 = vsub.s32 0, %v486
      %v488 = vsel %vm482, %v487, %v486
      %vm489 = vcmp.ne.s32.totalorder %v488, 0
      %vm490 = vcmp.lt.s32.totalorder %v488, 0
      %vm491 = vmand %vm490, %vm489
      %v492 = vadd.s32 %v488, 16
      %v493 = vsel %vm491, %v492, %v488
      %v494 = vld [vmem:[%s3] sm:$0xff]
      %v495 = vld [vmem:[%s3 + $0x8] sm:$0xff]
      %v496 = vld [vmem:[%s3 + $0x10] sm:$0xff]
      %v497 = vld [vmem:[%s3 + $0x18] sm:$0xff]
      %v498 = vadd.s32 %v493, 4294967295
      %vm499 = vcmp.ge.s32.totalorder %v498, 0
      %vm500 = vcmp.lt.s32.totalorder %v498, 16
      %vm501 = vmand %vm499, %vm500
      %v502 = vsel %vm501, 1, 0
      %vm503 = vcmp.eq.s32.totalorder %v502, 1
      %512 = vrot.lane.b32.xlu0 %v468, 17
      %v513 = vpop.permute.xlu0 %512
      %514 = vrot.lane.b32.xlu0 %v469, 17
      %v515 = vpop.permute.xlu0 %514
      %516 = vrot.lane.b32.xlu0 %v471, 17
      %v517 = vpop.permute.xlu0 %516
      %518 = vrot.lane.b32.xlu0 %v472, 17
      %v519 = vpop.permute.xlu0 %518
      %520 = vrot.lane.b32.xlu0 %v474, 17
      %v521 = vpop.permute.xlu0 %520
      %522 = vrot.lane.b32.xlu0 %v475, 17
      %v523 = vpop.permute.xlu0 %522
      %524 = vrot.lane.b32.xlu0 %v477, 17
      %v525 = vpop.permute.xlu0 %524
      %526 = vrot.lane.b32.xlu0 %v478, 17
      %v527 = vpop.permute.xlu0 %526
      %vm528 = vcmask 138240
      %v529 = vsel %vm528, %v513, %v515
      %v530 = vsel %vm528, %v517, %v519
      %v531 = vsel %vm528, %v521, %v523
      %v532 = vsel %vm528, %v525, %v527
      %v537 = vsel %vm503, %v529, 0.0
      %v538 = vsel %vm503, %v530, 0.0
      %v539 = vsel %vm503, %v531, 0.0
      %v540 = vsel %vm503, %v532, 0.0
      %542 = vset.pattern.permute.xlu0 0
      %543 = vperm.xlu0 %542, %v494
      %v544 = vpop.permute.xlu0 %543
      %547 = vset.pattern.permute.xlu0 0
      %548 = vperm.xlu0 %547, %v495
      %v549 = vpop.permute.xlu0 %548
      %552 = vset.pattern.permute.xlu0 0
      %553 = vperm.xlu0 %552, %v496
      %v554 = vpop.permute.xlu0 %553
      %557 = vset.pattern.permute.xlu0 0
      %558 = vperm.xlu0 %557, %v497
      %v559 = vpop.permute.xlu0 %558
      %v561 = vmul.f32 %v537, %v544
      %v562 = vmul.f32 %v538, %v549
      %v563 = vmul.f32 %v539, %v554
      %v564 = vmul.f32 %v540, %v559
      %v565 = vadd.f32 %v561, 0.0
      %v566 = vadd.f32 %v562, 0.0
      %v567 = vadd.f32 %v563, 0.0
      %v568 = vadd.f32 %v564, 0.0
      %569 = vset.pattern.permute.xlu0 1
      %570 = vperm.xlu0 %569, %v494
      %v571 = vpop.permute.xlu0 %570
      %573 = vset.pattern.permute.xlu0 1
      %574 = vperm.xlu0 %573, %v495
      %v575 = vpop.permute.xlu0 %574
      %577 = vset.pattern.permute.xlu0 1
      %578 = vperm.xlu0 %577, %v496
      %v579 = vpop.permute.xlu0 %578
      %581 = vset.pattern.permute.xlu0 1
      %582 = vperm.xlu0 %581, %v497
      %v583 = vpop.permute.xlu0 %582
      %v585 = vmul.f32 %v468, %v571
      %v586 = vmul.f32 %v469, %v571
      %v587 = vmul.f32 %v471, %v575
      %v588 = vmul.f32 %v472, %v575
      %v589 = vmul.f32 %v474, %v579
      %v590 = vmul.f32 %v475, %v579
      %v591 = vmul.f32 %v477, %v583
      %v592 = vmul.f32 %v478, %v583
      %601 = vrot.lane.b32.xlu0 %v585, 16
      %v602 = vpop.permute.xlu0 %601
      %603 = vrot.lane.b32.xlu0 %v586, 16
      %v604 = vpop.permute.xlu0 %603
      %605 = vrot.lane.b32.xlu0 %v587, 16
      %v606 = vpop.permute.xlu0 %605
      %607 = vrot.lane.b32.xlu0 %v588, 16
      %v608 = vpop.permute.xlu0 %607
      %609 = vrot.lane.b32.xlu0 %v589, 16
      %v610 = vpop.permute.xlu0 %609
      %611 = vrot.lane.b32.xlu0 %v590, 16
      %v612 = vpop.permute.xlu0 %611
      %613 = vrot.lane.b32.xlu0 %v591, 16
      %v614 = vpop.permute.xlu0 %613
      %615 = vrot.lane.b32.xlu0 %v592, 16
      %v616 = vpop.permute.xlu0 %615
      %vm617 = vcmask 130048
      %v618 = vsel %vm617, %v602, %v604
      %v619 = vsel %vm617, %v606, %v608
      %v620 = vsel %vm617, %v610, %v612
      %v621 = vsel %vm617, %v614, %v616
      %v626 = vadd.f32 %v565, %v618
      %v627 = vadd.f32 %v566, %v619
      %v628 = vadd.f32 %v567, %v620
      %v629 = vadd.f32 %v568, %v621
      %v630 = vadd.s32 %v493, 1
      %vm631 = vcmp.ge.s32.totalorder %v630, 0
      %vm632 = vcmp.lt.s32.totalorder %v630, 16
      %vm633 = vmand %vm631, %vm632
      %v634 = vsel %vm633, 1, 0
      %vm635 = vcmp.eq.s32.totalorder %v634, 1
      %636 = vrot.lane.b32.xlu0 %v468, 15
      %v637 = vpop.permute.xlu0 %636
      %638 = vrot.lane.b32.xlu0 %v469, 15
      %v639 = vpop.permute.xlu0 %638
      %640 = vrot.lane.b32.xlu0 %v471, 15
      %v641 = vpop.permute.xlu0 %640
      %642 = vrot.lane.b32.xlu0 %v472, 15
      %v643 = vpop.permute.xlu0 %642
      %644 = vrot.lane.b32.xlu0 %v474, 15
      %v645 = vpop.permute.xlu0 %644
      %646 = vrot.lane.b32.xlu0 %v475, 15
      %v647 = vpop.permute.xlu0 %646
      %648 = vrot.lane.b32.xlu0 %v477, 15
      %v649 = vpop.permute.xlu0 %648
      %650 = vrot.lane.b32.xlu0 %v478, 15
      %v651 = vpop.permute.xlu0 %650
      %vm652 = vcmask 121856
      %v653 = vsel %vm652, %v637, %v639
      %v654 = vsel %vm652, %v641, %v643
      %v655 = vsel %vm652, %v645, %v647
      %v656 = vsel %vm652, %v649, %v651
      %v661 = vsel %vm635, %v653, 0.0
      %v662 = vsel %vm635, %v654, 0.0
      %v663 = vsel %vm635, %v655, 0.0
      %v664 = vsel %vm635, %v656, 0.0
      %665 = vset.pattern.permute.xlu0 2
      %666 = vperm.xlu0 %665, %v494
      %v667 = vpop.permute.xlu0 %666
      %669 = vset.pattern.permute.xlu0 2
      %670 = vperm.xlu0 %669, %v495
      %v671 = vpop.permute.xlu0 %670
      %673 = vset.pattern.permute.xlu0 2
      %674 = vperm.xlu0 %673, %v496
      %v675 = vpop.permute.xlu0 %674
      %677 = vset.pattern.permute.xlu0 2
      %678 = vperm.xlu0 %677, %v497
      %v679 = vpop.permute.xlu0 %678
      %v681 = vmul.f32 %v661, %v667
      %v682 = vmul.f32 %v662, %v671
      %v683 = vmul.f32 %v663, %v675
      %v684 = vmul.f32 %v664, %v679
      %v685 = vadd.f32 %v626, %v681
      %v686 = vadd.f32 %v627, %v682
      %v687 = vadd.f32 %v628, %v683
      %v688 = vadd.f32 %v629, %v684
      %689 = vrot.lane.b32.xlu0 %v468, 1
      %v690 = vpop.permute.xlu0 %689
      %691 = vrot.lane.b32.xlu0 %v469, 1
      %v692 = vpop.permute.xlu0 %691
      %693 = vrot.lane.b32.xlu0 %v471, 1
      %v694 = vpop.permute.xlu0 %693
      %695 = vrot.lane.b32.xlu0 %v472, 1
      %v696 = vpop.permute.xlu0 %695
      %697 = vrot.lane.b32.xlu0 %v474, 1
      %v698 = vpop.permute.xlu0 %697
      %699 = vrot.lane.b32.xlu0 %v475, 1
      %v700 = vpop.permute.xlu0 %699
      %701 = vrot.lane.b32.xlu0 %v477, 1
      %v702 = vpop.permute.xlu0 %701
      %703 = vrot.lane.b32.xlu0 %v478, 1
      %v704 = vpop.permute.xlu0 %703
      %vm705 = vcmask 7168
      %v706 = vsel %vm705, %v690, %v692
      %v707 = vsel %vm705, %v694, %v696
      %v708 = vsel %vm705, %v698, %v700
      %v709 = vsel %vm705, %v702, %v704
      %v714 = vsel %vm503, %v706, 0.0
      %v715 = vsel %vm503, %v707, 0.0
      %v716 = vsel %vm503, %v708, 0.0
      %v717 = vsel %vm503, %v709, 0.0
      %718 = vset.pattern.permute.xlu0 3
      %719 = vperm.xlu0 %718, %v494
      %v720 = vpop.permute.xlu0 %719
      %722 = vset.pattern.permute.xlu0 3
      %723 = vperm.xlu0 %722, %v495
      %v724 = vpop.permute.xlu0 %723
      %726 = vset.pattern.permute.xlu0 3
      %727 = vperm.xlu0 %726, %v496
      %v728 = vpop.permute.xlu0 %727
      %730 = vset.pattern.permute.xlu0 3
      %731 = vperm.xlu0 %730, %v497
      %v732 = vpop.permute.xlu0 %731
      %v734 = vmul.f32 %v714, %v720
      %v735 = vmul.f32 %v715, %v724
      %v736 = vmul.f32 %v716, %v728
      %v737 = vmul.f32 %v717, %v732
      %v738 = vadd.f32 %v685, %v734
      %v739 = vadd.f32 %v686, %v735
      %v740 = vadd.f32 %v687, %v736
      %v741 = vadd.f32 %v688, %v737
      %742 = vset.pattern.permute.xlu0 4
      %743 = vperm.xlu0 %742, %v494
      %v744 = vpop.permute.xlu0 %743
      %746 = vset.pattern.permute.xlu0 4
      %747 = vperm.xlu0 %746, %v495
      %v748 = vpop.permute.xlu0 %747
      %750 = vset.pattern.permute.xlu0 4
      %751 = vperm.xlu0 %750, %v496
      %v752 = vpop.permute.xlu0 %751
      %754 = vset.pattern.permute.xlu0 4
      %755 = vperm.xlu0 %754, %v497
      %v756 = vpop.permute.xlu0 %755
      %v758 = vmul.f32 %v469, %v744
      %v759 = vmul.f32 %v472, %v748
      %v760 = vmul.f32 %v475, %v752
      %v761 = vmul.f32 %v478, %v756
      %v762 = vadd.f32 %v738, %v758
      %v763 = vadd.f32 %v739, %v759
      %v764 = vadd.f32 %v740, %v760
      %v765 = vadd.f32 %v741, %v761
      %770 = vrot.lane.b32.xlu0 %v469, 127
      %v771 = vpop.permute.xlu0 %770
      %772 = vrot.lane.b32.xlu0 %v470, 127
      %v773 = vpop.permute.xlu0 %772
      %774 = vrot.lane.b32.xlu0 %v472, 127
      %v775 = vpop.permute.xlu0 %774
      %776 = vrot.lane.b32.xlu0 %v473, 127
      %v777 = vpop.permute.xlu0 %776
      %778 = vrot.lane.b32.xlu0 %v475, 127
      %v779 = vpop.permute.xlu0 %778
      %780 = vrot.lane.b32.xlu0 %v476, 127
      %v781 = vpop.permute.xlu0 %780
      %782 = vrot.lane.b32.xlu0 %v478, 127
      %v783 = vpop.permute.xlu0 %782
      %784 = vrot.lane.b32.xlu0 %v479, 127
      %v785 = vpop.permute.xlu0 %784
      %vm786 = vcmask 1039360
      %v787 = vsel %vm786, %v771, %v773
      %v788 = vsel %vm786, %v775, %v777
      %v789 = vsel %vm786, %v779, %v781
      %v790 = vsel %vm786, %v783, %v785
      %v795 = vsel %vm635, %v787, 0.0
      %v796 = vsel %vm635, %v788, 0.0
      %v797 = vsel %vm635, %v789, 0.0
      %v798 = vsel %vm635, %v790, 0.0
      %799 = vset.pattern.permute.xlu0 5
      %800 = vperm.xlu0 %799, %v494
      %v801 = vpop.permute.xlu0 %800
      %803 = vset.pattern.permute.xlu0 5
      %804 = vperm.xlu0 %803, %v495
      %v805 = vpop.permute.xlu0 %804
      %807 = vset.pattern.permute.xlu0 5
      %808 = vperm.xlu0 %807, %v496
      %v809 = vpop.permute.xlu0 %808
      %811 = vset.pattern.permute.xlu0 5
      %812 = vperm.xlu0 %811, %v497
      %v813 = vpop.permute.xlu0 %812
      %v815 = vmul.f32 %v795, %v801
      %v816 = vmul.f32 %v796, %v805
      %v817 = vmul.f32 %v797, %v809
      %v818 = vmul.f32 %v798, %v813
      %v819 = vadd.f32 %v762, %v815
      %v820 = vadd.f32 %v763, %v816
      %v821 = vadd.f32 %v764, %v817
      %v822 = vadd.f32 %v765, %v818
      %823 = vrot.lane.b32.xlu0 %v469, 113
      %v824 = vpop.permute.xlu0 %823
      %825 = vrot.lane.b32.xlu0 %v470, 113
      %v826 = vpop.permute.xlu0 %825
      %827 = vrot.lane.b32.xlu0 %v472, 113
      %v828 = vpop.permute.xlu0 %827
      %829 = vrot.lane.b32.xlu0 %v473, 113
      %v830 = vpop.permute.xlu0 %829
      %831 = vrot.lane.b32.xlu0 %v475, 113
      %v832 = vpop.permute.xlu0 %831
      %833 = vrot.lane.b32.xlu0 %v476, 113
      %v834 = vpop.permute.xlu0 %833
      %835 = vrot.lane.b32.xlu0 %v478, 113
      %v836 = vpop.permute.xlu0 %835
      %837 = vrot.lane.b32.xlu0 %v479, 113
      %v838 = vpop.permute.xlu0 %837
      %vm839 = vcmask 924672
      %v840 = vsel %vm839, %v824, %v826
      %v841 = vsel %vm839, %v828, %v830
      %v842 = vsel %vm839, %v832, %v834
      %v843 = vsel %vm839, %v836, %v838
      %v848 = vsel %vm503, %v840, 0.0
      %v849 = vsel %vm503, %v841, 0.0
      %v850 = vsel %vm503, %v842, 0.0
      %v851 = vsel %vm503, %v843, 0.0
      %852 = vset.pattern.permute.xlu0 6
      %853 = vperm.xlu0 %852, %v494
      %v854 = vpop.permute.xlu0 %853
      %856 = vset.pattern.permute.xlu0 6
      %857 = vperm.xlu0 %856, %v495
      %v858 = vpop.permute.xlu0 %857
      %860 = vset.pattern.permute.xlu0 6
      %861 = vperm.xlu0 %860, %v496
      %v862 = vpop.permute.xlu0 %861
      %864 = vset.pattern.permute.xlu0 6
      %865 = vperm.xlu0 %864, %v497
      %v866 = vpop.permute.xlu0 %865
      %v868 = vmul.f32 %v848, %v854
      %v869 = vmul.f32 %v849, %v858
      %v870 = vmul.f32 %v850, %v862
      %v871 = vmul.f32 %v851, %v866
      %v872 = vadd.f32 %v819, %v868
      %v873 = vadd.f32 %v820, %v869
      %v874 = vadd.f32 %v821, %v870
      %v875 = vadd.f32 %v822, %v871
      %876 = vset.pattern.permute.xlu0 7
      %877 = vperm.xlu0 %876, %v494
      %v878 = vpop.permute.xlu0 %877
      %880 = vset.pattern.permute.xlu0 7
      %881 = vperm.xlu0 %880, %v495
      %v882 = vpop.permute.xlu0 %881
      %884 = vset.pattern.permute.xlu0 7
      %885 = vperm.xlu0 %884, %v496
      %v886 = vpop.permute.xlu0 %885
      %888 = vset.pattern.permute.xlu0 7
      %889 = vperm.xlu0 %888, %v497
      %v890 = vpop.permute.xlu0 %889
      %v892 = vmul.f32 %v469, %v878
      %v893 = vmul.f32 %v470, %v878
      %v894 = vmul.f32 %v472, %v882
      %v895 = vmul.f32 %v473, %v882
      %v896 = vmul.f32 %v475, %v886
      %v897 = vmul.f32 %v476, %v886
      %v898 = vmul.f32 %v478, %v890
      %v899 = vmul.f32 %v479, %v890
      %908 = vrot.lane.b32.xlu0 %v892, 112
      %v909 = vpop.permute.xlu0 %908
      %910 = vrot.lane.b32.xlu0 %v893, 112
      %v911 = vpop.permute.xlu0 %910
      %912 = vrot.lane.b32.xlu0 %v894, 112
      %v913 = vpop.permute.xlu0 %912
      %914 = vrot.lane.b32.xlu0 %v895, 112
      %v915 = vpop.permute.xlu0 %914
      %916 = vrot.lane.b32.xlu0 %v896, 112
      %v917 = vpop.permute.xlu0 %916
      %918 = vrot.lane.b32.xlu0 %v897, 112
      %v919 = vpop.permute.xlu0 %918
      %920 = vrot.lane.b32.xlu0 %v898, 112
      %v921 = vpop.permute.xlu0 %920
      %922 = vrot.lane.b32.xlu0 %v899, 112
      %v923 = vpop.permute.xlu0 %922
      %vm924 = vcmask 916480
      %v925 = vsel %vm924, %v909, %v911
      %v926 = vsel %vm924, %v913, %v915
      %v927 = vsel %vm924, %v917, %v919
      %v928 = vsel %vm924, %v921, %v923
      %v933 = vadd.f32 %v872, %v925
      %v934 = vadd.f32 %v873, %v926
      %v935 = vadd.f32 %v874, %v927
      %v936 = vadd.f32 %v875, %v928
      %937 = vrot.lane.b32.xlu0 %v469, 111
      %v938 = vpop.permute.xlu0 %937
      %939 = vrot.lane.b32.xlu0 %v470, 111
      %v940 = vpop.permute.xlu0 %939
      %941 = vrot.lane.b32.xlu0 %v472, 111
      %v942 = vpop.permute.xlu0 %941
      %943 = vrot.lane.b32.xlu0 %v473, 111
      %v944 = vpop.permute.xlu0 %943
      %945 = vrot.lane.b32.xlu0 %v475, 111
      %v946 = vpop.permute.xlu0 %945
      %947 = vrot.lane.b32.xlu0 %v476, 111
      %v948 = vpop.permute.xlu0 %947
      %949 = vrot.lane.b32.xlu0 %v478, 111
      %v950 = vpop.permute.xlu0 %949
      %951 = vrot.lane.b32.xlu0 %v479, 111
      %v952 = vpop.permute.xlu0 %951
      %vm953 = vcmask 908288
      %v954 = vsel %vm953, %v938, %v940
      %v955 = vsel %vm953, %v942, %v944
      %v956 = vsel %vm953, %v946, %v948
      %v957 = vsel %vm953, %v950, %v952
      %v962 = vsel %vm635, %v954, 0.0
      %v963 = vsel %vm635, %v955, 0.0
      %v964 = vsel %vm635, %v956, 0.0
      %v965 = vsel %vm635, %v957, 0.0
      %966 = vset.pattern.permute.xlu0 8
      %967 = vperm.xlu0 %966, %v494
      %v968 = vpop.permute.xlu0 %967
      %970 = vset.pattern.permute.xlu0 8
      %971 = vperm.xlu0 %970, %v495
      %v972 = vpop.permute.xlu0 %971
      %974 = vset.pattern.permute.xlu0 8
      %975 = vperm.xlu0 %974, %v496
      %v976 = vpop.permute.xlu0 %975
      %978 = vset.pattern.permute.xlu0 8
      %979 = vperm.xlu0 %978, %v497
      %v980 = vpop.permute.xlu0 %979
      %v982 = vmul.f32 %v962, %v968
      %v983 = vmul.f32 %v963, %v972
      %v984 = vmul.f32 %v964, %v976
      %v985 = vmul.f32 %v965, %v980
      %v986 = vadd.f32 %v933, %v982
      %v987 = vadd.f32 %v934, %v983
      %v988 = vadd.f32 %v935, %v984
      %v989 = vadd.f32 %v936, %v985
      %v990 = vld [vmem:[%s4] sm:$0xff]
      %v991 = vld [vmem:[%s4 + $0x8] sm:$0xff]
      %v992 = vld [vmem:[%s4 + $0x10] sm:$0xff]
      %v993 = vld [vmem:[%s4 + $0x18] sm:$0xff]
      %995 = vset.pattern.permute.xlu0 0
      %996 = vperm.xlu0 %995, %v990
      %v997 = vpop.permute.xlu0 %996
      %1000 = vset.pattern.permute.xlu0 0
      %1001 = vperm.xlu0 %1000, %v991
      %v1002 = vpop.permute.xlu0 %1001
      %1005 = vset.pattern.permute.xlu0 0
      %1006 = vperm.xlu0 %1005, %v992
      %v1007 = vpop.permute.xlu0 %1006
      %1010 = vset.pattern.permute.xlu0 0
      %1011 = vperm.xlu0 %1010, %v993
      %v1012 = vpop.permute.xlu0 %1011
      %v1014 = vadd.f32 %v986, %v997
      %v1015 = vadd.f32 %v987, %v1002
      %v1016 = vadd.f32 %v988, %v1007
      %v1017 = vadd.f32 %v989, %v1012
      %v1018 = vmax.f32 %v1014, 0.0
      %v1019 = vmax.f32 %v1015, 0.0
      %v1020 = vmax.f32 %v1016, 0.0
      %v1021 = vmax.f32 %v1017, 0.0
      %v1022 = vmin.f32 %v1018, 6.0
      %v1023 = vmin.f32 %v1019, 6.0
      %v1024 = vmin.f32 %v1020, 6.0
      %v1025 = vmin.f32 %v1021, 6.0
      %v1026 = vld [vmem:[%s5] sm:$0xff]
      %s1027 = smul.addr %s464, 8
      %s1028 = scalar_lea.vmem %s290, %s1027
      %v1029 = vld [vmem:[%s1028] sm:$0xff]
      %v1030 = vld [vmem:[%s6] sm:$0xff]
      %1032 = vset.pattern.permute.xlu0 0
      %1033 = vperm.xlu0 %1032, %v1030
      %v1034 = vpop.permute.xlu0 %1033
      %vm1036 = vcmask 261120
      %v1038 = vsel %vm1036, %v1026, 0
      %1040 = vmatprep.subr.mxu0 0.0
      %1041 = vmatpush1.msra.mxu0 %v1022
      %1042 = vmatprep.subr.mxu0 0.0
      %1043 = vmatpush1.msra.mxu0 %v1023
      %1044 = vmatprep.subr.mxu0 0.0
      %1045 = vmatpush1.msra.mxu0 %v1024
      %1046 = vmatprep.subr.mxu0 0.0
      %1047 = vmatpush1.msra.mxu0 %v1025
      %1048 = vmatprep.subr.mxu0 0.0
      %1049 = vmatpush1.msra.mxu0 0.0
      %1050 = vmatprep.subr.mxu0 0.0
      %1051 = vmatpush1.msra.mxu0 0.0
      %1052 = vmatprep.subr.mxu0 0.0
      %1053 = vmatpush1.msra.mxu0 0.0
      %1054 = vmatprep.subr.mxu0 0.0
      %1055 = vmatpush1.msra.mxu0 0.0
      %1056 = vmatprep.subr.mxu0 0.0
      %1057 = vmatpush1.msra.mxu0 0.0
      %1058 = vmatprep.subr.mxu0 0.0
      %1059 = vmatpush1.msra.mxu0 0.0
      %1060 = vmatprep.subr.mxu0 0.0
      %1061 = vmatpush1.msra.mxu0 0.0
      %1062 = vmatprep.subr.mxu0 0.0
      %1063 = vmatpush1.msra.mxu0 0.0
      %1064 = vmatprep.subr.mxu0 0.0
      %1065 = vmatpush1.msra.mxu0 0.0
      %1066 = vmatprep.subr.mxu0 0.0
      %1067 = vmatpush1.msra.mxu0 0.0
      %1068 = vmatprep.subr.mxu0 0.0
      %1069 = vmatpush1.msra.mxu0 0.0
      %1070 = vmatprep.subr.mxu0 0.0
      %1071 = vmatpush1.msra.mxu0 0.0
      %1072 = vmatprep.subr.mxu0 0.0
      %1073 = vmatpush1.msra.mxu0 0.0
      %1074 = vmatprep.subr.mxu0 0.0
      %1075 = vmatpush1.msra.mxu0 0.0
      %1076 = vmatprep.subr.mxu0 0.0
      %1077 = vmatpush1.msra.mxu0 0.0
      %1078 = vmatprep.subr.mxu0 0.0
      %1079 = vmatpush1.msra.mxu0 0.0
      %1080 = vmatprep.subr.mxu0 0.0
      %1081 = vmatpush1.msra.mxu0 0.0
      %1082 = vmatprep.subr.mxu0 0.0
      %1083 = vmatpush1.msra.mxu0 0.0
      %1084 = vmatprep.subr.mxu0 0.0
      %1085 = vmatpush1.msra.mxu0 0.0
      %1086 = vmatprep.subr.mxu0 0.0
      %1087 = vmatpush1.msra.mxu0 0.0
      %1088 = vmatprep.subr.mxu0 0.0
      %1089 = vmatpush1.msra.mxu0 0.0
      %1090 = vmatprep.subr.mxu0 0.0
      %1091 = vmatpush1.msra.mxu0 0.0
      %1092 = vmatprep.subr.mxu0 0.0
      %1093 = vmatpush1.msra.mxu0 0.0
      %1094 = vmatprep.subr.mxu0 0.0
      %1095 = vmatpush1.msra.mxu0 0.0
      %1096 = vmatprep.subr.mxu0 0.0
      %1097 = vmatpush1.msra.mxu0 0.0
      %1098 = vmatprep.subr.mxu0 0.0
      %1099 = vmatpush1.msra.mxu0 0.0
      %1100 = vmatprep.subr.mxu0 0.0
      %1101 = vmatpush1.msra.mxu0 0.0
      %1102 = vmatprep.subr.mxu0 0.0
      %1103 = vmatpush1.msra.mxu0 0.0
      %1104 = vmatprep.mubr.f32.mxu0 0.0
      %1105 = vmatmul.mubr.f32.gmra.mrb[0].mxu0 %v1038
      %v1106 = vpop.f32.mrb[0].mxu0
      %v1107 = vadd.f32 %v1034, %v1106
      %v1108 = vpop.f32.mrb[0].mxu0
      %1109 = vdwg.mxu0
      %v1110 = vadd.f32 %v1107, %v1029
      %1111 = vst [vmem:[%s298] sm:$0xff] %v1110
      %p1112 = scmp.lt.s32.totalorder %s22, 1
      %s1113 = scalar_select %p1112, %s22, 1
      %p1114 = scmp.lt.s32.totalorder %s23, 1
      %s1115 = scalar_select %p1114, %s23, 1
      %s1116 = smul.addr %s1113, 2
      %s1117 = sadd.s32 %s1115, %s1116
      %s1118 = smul.addr %s1117, 8
      %s1119 = scalar_lea.vmem %s7, %s1118
      // Predicated region
      $region49: #{inverted_block_forward.1} parent=47 // pred_check
        %p1120 = pneg %p202
      $region50: #{inverted_block_forward.1} parent=47 // pred_check_branch
        %1122 = sbr.rel (%p1120) target = $region52
      $region51: #{inverted_block_forward.1} parent=47 // pred_region
        _
      $region52: #{inverted_block_forward.1} parent=47 // pred_fallthru
        _
    $region48: #{inverted_block_forward.1} parent=5 // pred_fallthru
      _
    %p1123 = scmp.le.s32.totalorder 2, %s13
    // Predicated region
    $region53: #{inverted_block_forward.1} parent=5 // pred_check
      %p1124 = pneg %p1123
    $region54: #{inverted_block_forward.1} parent=5 // pred_check_branch
      %1126 = sbr.rel (%p1124) target = $region56
    $region55: #{inverted_block_forward.1} parent=5 // pred_region
      %s1127 = ssub.s32 %s13, 2
      // Predicated region
      $region57: #{inverted_block_forward.1} parent=55 // pred_check
        %p1128 = pneg %p208
      $region58: #{inverted_block_forward.1} parent=55 // pred_check_branch
        %1130 = sbr.rel (%p1128) target = $region60
      $region59: #{inverted_block_forward.1} parent=55 // pred_region
        %p1131 = scmp.lt.s32.totalorder %s24, 1
        %s1132 = scalar_select %p1131, %s24, 1
        %p1133 = scmp.lt.s32.totalorder %s25, 1
        %s1134 = scalar_select %p1133, %s25, 1
        %s1135 = smul.addr %s1132, 2
        %s1136 = sadd.s32 %s1134, %s1135
        %s1137 = smul.addr %s1136, 8
        %s1138 = scalar_lea.vmem %s7, %s1137
      $region60: #{inverted_block_forward.1} parent=55 // pred_fallthru
        _
    $region56: #{inverted_block_forward.1} parent=5 // pred_fallthru
      _
  $region6: #{inverted_block_forward.1} parent=0 // loop_footer
    %s17 = sadd.s32 1, %s13
  $region7: #{inverted_block_forward.1} parent=0 // loop_footer_branch
    %12 = sbr.rel target = $region3
  $region8: #{inverted_block_forward.1} parent=0 // loop_exit
    _

</llo_original>
